<compile_context>
chip_gen: v7x
topology: tpu7x:2x2x1
jax: 0.10.0
libtpu: 0.0.40
codegen_flags: <defaults>
</compile_context>

<pallas_src>
import functools

import jax
import jax.numpy as jnp
from jax.experimental import pallas as pl
from jax.experimental.pallas import tpu as pltpu

LANES = 128
# 4096 rows x 128 lanes x 4 B = 2 MiB per f32 input block; double-buffered for
# two inputs -> 8 MiB of VMEM buffers (4 MiB for bf16).  Fits the scoped-VMEM
# budgets on v5e / v6e / v7x with headroom.
MAX_TILE_ROWS = 4096
# Leading "parallel" grid axis so the v7x megacore (2 TCs sharing ~3.2 TB/s of
# HBM) splits the BW-bound reduction; harmless (sequential) on v5e / v6e.
NUM_CORE_SPLITS = 2


def _dice_kernel(o_ref, t_ref, acc_ref, *, blocks_total, blocks_per_split,
                 block_rows, full_rows, rem_lanes):
    p = pl.program_id(0)                      # parallel (core-split) axis
    j = pl.program_id(1)                      # sequential streaming axis
    blk = p * blocks_per_split + j            # unclamped logical block index

    @pl.when(j == 0)
    def _init():
        acc_ref[...] = jnp.zeros_like(acc_ref)

    s = jax.nn.sigmoid(o_ref[...].astype(jnp.float32))
    t = t_ref[...].astype(jnp.float32)

    def accumulate(sv, tv):
        # Per-lane partial sums; cross-lane reduce + eps epilogue run once in
        # the JAX tail.  One merged (1, 3, 128) update per step.
        partial = jnp.concatenate(
            [jnp.sum(sv * tv, axis=0, keepdims=True),   # sum(sigmoid(o) * t)
             jnp.sum(sv, axis=0, keepdims=True),        # sum(sigmoid(o))
             jnp.sum(tv, axis=0, keepdims=True)],       # sum(t)
            axis=0)
        acc_ref[...] += partial[None]

    @pl.when(blk < blocks_total - 1)
    def _hot():
        # Every logical block except the last is fully valid -> no mask cost.
        accumulate(s, t)

    @pl.when(blk >= blocks_total - 1)
    def _masked():
        # The final logical block may contain host-padded lanes or Pallas
        # out-of-bounds rows; duplicate blocks (blk >= blocks_total, produced
        # by the clamped index_map when blocks_total % num_splits != 0) must
        # contribute nothing.  Row/col comparisons stay in int32 with no
        # overflow for any realistic n (< 2**38 elements).
        br, c = s.shape
        row = jax.lax.broadcasted_iota(jnp.int32, (br, c), 0)
        col = jax.lax.broadcasted_iota(jnp.int32, (br, c), 1)
        grow = blk * block_rows + row
        mask = grow < full_rows
        if rem_lanes:
            mask = jnp.logical_or(
                mask, jnp.logical_and(grow == full_rows, col < rem_lanes))
        # Keep this a select (jnp.where), NOT multiply-by-mask: sigmoid of
        # out-of-bounds garbage can be NaN/Inf and must not propagate.
        accumulate(jnp.where(mask, s, 0.0), jnp.where(mask, t, 0.0))


def dice_loss(outputs, targets, eps=1e-6, max_tile_rows=MAX_TILE_ROWS):
    """DiceLoss.forward with per_image=False (reference PyTorch semantics).

    Inputs stream in their native dtype (feed bf16/int8 targets from the data
    pipeline if possible); the kernel upcasts to f32 per tile.
    """
    assert outputs.shape == targets.shape
    assert max_tile_rows % 8 == 0
    n = int(outputs.size)
    assert n > 0

    # Flatten in the native dtype (no host-side f32 cast).
    o_flat = outputs.reshape(-1)
    t_flat = targets.reshape(-1)

    rem_lanes = n % LANES
    if rem_lanes:
        # TODO(synk): this pad materializes a full copy of both inputs for
        # non-128-aligned sizes; manual pl.ANY DMA streaming of the unpadded
        # flats would remove it.  Lane-aligned (typical NCHW) sizes skip it.
        pad = LANES - rem_lanes
        o_flat = jnp.pad(o_flat, (0, pad))
        t_flat = jnp.pad(t_flat, (0, pad))

    rows = o_flat.size // LANES
    o2d = o_flat.reshape(rows, LANES)
    t2d = t_flat.reshape(rows, LANES)

    # Biggest block that fits double-buffered VMEM comfortably on all of
    # v5e / v6e / v7x; a whole-array block is always legal when smaller.
    block_rows = rows if rows <= max_tile_rows else max_tile_rows
    blocks_total = int(pl.cdiv(rows, block_rows))

    # Split the streaming reduction across TensorCores (v7x megacore).
    num_splits = NUM_CORE_SPLITS if blocks_total >= NUM_CORE_SPLITS else 1
    blocks_per_split = int(pl.cdiv(blocks_total, num_splits))

    def in_map(p, j):
        # Clamp so duplicate assignments stay in bounds; the kernel masks
        # their contribution to zero.
        return (jnp.minimum(p * blocks_per_split + j, blocks_total - 1), 0)

    kernel = functools.partial(
        _dice_kernel,
        blocks_total=blocks_total,
        blocks_per_split=blocks_per_split,
        block_rows=int(block_rows),
        full_rows=n // LANES,
        rem_lanes=rem_lanes,
    )

    cost = pl.CostEstimate(
        flops=6 * n,
        transcendentals=n,
        bytes_accessed=(o2d.size * o2d.dtype.itemsize
                        + t2d.size * t2d.dtype.itemsize
                        + num_splits * 3 * LANES * 4),
    )

    partials = pl.pallas_call(
        kernel,
        out_shape=jax.ShapeDtypeStruct((num_splits, 3, LANES), jnp.float32),
        grid_spec=pltpu.PrefetchScalarGridSpec(
            num_scalar_prefetch=0,
            grid=(num_splits, blocks_per_split),
            in_specs=[
                pl.BlockSpec((block_rows, LANES), in_map),
                pl.BlockSpec((block_rows, LANES), in_map),
            ],
            # Per-core partial sums; resident across the "arbitrary" axis.
            out_specs=pl.BlockSpec((1, 3, LANES), lambda p, j: (p, 0, 0)),
        ),
        compiler_params=pltpu.CompilerParams(
            dimension_semantics=("parallel", "arbitrary"),
            vmem_limit_bytes=32 * 1024 * 1024,
        ),
        cost_estimate=cost,
    )(o2d, t2d)

    # Scalar epilogue in JAX (per_image=False -> single group; the batch mean
    # of the reference is a no-op).
    sums = jnp.sum(partials, axis=(0, 2))          # [intersection, sum_s, sum_t]
    intersection = sums[0]
    union = sums[1] + sums[2] + eps
    return 1.0 - (2.0 * intersection + eps) / union


def dice_loss_ref(outputs, targets, eps=1e-6):
    """Pure-JAX reference mirroring the PyTorch module (per_image=False)."""
    o = jax.nn.sigmoid(outputs.astype(jnp.float32)).reshape(1, -1)
    t = targets.astype(jnp.float32).reshape(1, -1)
    intersection = jnp.sum(o * t, axis=1)
    union = jnp.sum(o, axis=1) + jnp.sum(t, axis=1) + eps
    return jnp.mean(1.0 - (2.0 * intersection + eps) / union)


if __name__ == "__main__":
    key = jax.random.PRNGKey(0)
    k1, k2, k3, k4, k5, k6 = jax.random.split(key, 6)

    # NCHW logits and binary targets (lane-aligned copy-free fast path).
    x = jax.random.normal(k1, (2, 4, 16, 16), dtype=jnp.float32)
    y = (jax.random.uniform(k2, (2, 4, 16, 16)) > 0.5).astype(jnp.float32)
    loss = jax.block_until_ready(dice_loss(x, y))
    ref = dice_loss_ref(x, y)
    assert jnp.allclose(loss, ref, atol=1e-5, rtol=1e-5), (loss, ref)

    # Ragged element count: tail pad + in-kernel partial-row mask.
    x2 = jax.random.normal(k3, (1, 3, 11, 13), dtype=jnp.float32)
    y2 = (jax.random.uniform(k4, (1, 3, 11, 13)) > 0.5).astype(jnp.float32)
    loss2 = jax.block_until_ready(dice_loss(x2, y2))
    ref2 = dice_loss_ref(x2, y2)
    assert jnp.allclose(loss2, ref2, atol=1e-5, rtol=1e-5), (loss2, ref2)

    # Tiny tile forces the 2-way core split, multi-block streaming, a clamped
    # duplicate block and a partial last block -- with bf16 inputs.
    x3 = jax.random.normal(k5, (2, 4, 20, 16), dtype=jnp.bfloat16)
    y3 = (jax.random.uniform(k6, (2, 4, 20, 16)) > 0.5).astype(jnp.bfloat16)
    loss3 = jax.block_until_ready(dice_loss(x3, y3, max_tile_rows=8))
    ref3 = dice_loss_ref(x3, y3)
    assert jnp.allclose(loss3, ref3, atol=1e-4, rtol=1e-4), (loss3, ref3)

    print("KERNEL_OK")
</pallas_src>

<mosaic_0001>
module attributes {stable_mosaic.version = 11 : i64} {
  func.func @_dice_kernel(%arg0: i32, %arg1: i32, %arg2: memref<16x128xf32, #tpu.memory_space<vmem>>, %arg3: memref<16x128xf32, #tpu.memory_space<vmem>>, %arg4: memref<1x3x128xf32, #tpu.memory_space<vmem>>) attributes {dimension_semantics = [#tpu.dimension_semantics<parallel>, #tpu.dimension_semantics<arbitrary>], iteration_bounds = array<i64: 1, 1>, scalar_prefetch = 0 : i64, scratch_operands = 0 : i64, tpu.core_type = #tpu.core_type<tc>, window_params = [{transform_indices = @transform_0, window_bounds = array<i64: 16, 128>}, {transform_indices = @transform_1, window_bounds = array<i64: 16, 128>}, {transform_indices = @transform_2, window_bounds = array<i64: 1, 3, 128>}]} {
    %c1_i32 = arith.constant 1 : i32
    %0 = arith.muli %arg0, %c1_i32 : i32
    %1 = arith.addi %0, %arg1 : i32
    %c0_i32 = arith.constant 0 : i32
    %2 = arith.cmpi eq, %arg1, %c0_i32 : i32
    %3 = arith.extui %2 : i1 to i32
    %c0_i32_0 = arith.constant 0 : i32
    %4 = arith.cmpi ne, %3, %c0_i32_0 : i32
    scf.if %4 {
      %cst_8 = arith.constant 0.000000e+00 : f32
      %18 = vector.broadcast %cst_8 : f32 to vector<1x3x128xf32>
      %c0_9 = arith.constant 0 : index
      %c0_10 = arith.constant 0 : index
      %c0_11 = arith.constant 0 : index
      %19 = vector.load %arg4[%c0_9, %c0_10, %c0_11] : memref<1x3x128xf32, #tpu.memory_space<vmem>>, vector<1x3x128xf32>
      tpu.vector_store %arg4[%c0_9, %c0_10, %c0_11], %18 {strides = array<i32>} : memref<1x3x128xf32, #tpu.memory_space<vmem>>, vector<1x3x128xf32>,
    } else {
    }
    %c0 = arith.constant 0 : index
    %c0_1 = arith.constant 0 : index
    %5 = vector.load %arg2[%c0, %c0_1] : memref<16x128xf32, #tpu.memory_space<vmem>>, vector<16x128xf32>
    %6 = arith.negf %5 : vector<16x128xf32>
    %7 = math.exp %6 : vector<16x128xf32>
    %cst = arith.constant 1.000000e+00 : f32
    %8 = vector.broadcast %cst : f32 to vector<16x128xf32>
    %9 = arith.addf %8, %7 : vector<16x128xf32>
    %10 = arith.divf %8, %9 : vector<16x128xf32>
    %c0_2 = arith.constant 0 : index
    %c0_3 = arith.constant 0 : index
    %11 = vector.load %arg3[%c0_2, %c0_3] : memref<16x128xf32, #tpu.memory_space<vmem>>, vector<16x128xf32>
    %c0_i32_4 = arith.constant 0 : i32
    %12 = arith.cmpi slt, %1, %c0_i32_4 : i32
    %13 = arith.extui %12 : i1 to i32
    %c0_i32_5 = arith.constant 0 : i32
    %14 = arith.cmpi ne, %13, %c0_i32_5 : i32
    scf.if %14 {
      %18 = arith.mulf %10, %11 : vector<16x128xf32>
      %cst_8 = arith.constant dense<0.000000e+00> : vector<128xf32>
      %19 = vector.multi_reduction <add>, %18, %cst_8 [0] : vector<16x128xf32> to vector<128xf32>
      %20 = vector.shape_cast %19 : vector<128xf32> to vector<1x128xf32>
      %cst_9 = arith.constant dense<0.000000e+00> : vector<128xf32>
      %21 = vector.multi_reduction <add>, %10, %cst_9 [0] : vector<16x128xf32> to vector<128xf32>
      %22 = vector.shape_cast %21 : vector<128xf32> to vector<1x128xf32>
      %cst_10 = arith.constant dense<0.000000e+00> : vector<128xf32>
      %23 = vector.multi_reduction <add>, %11, %cst_10 [0] : vector<16x128xf32> to vector<128xf32>
      %24 = vector.shape_cast %23 : vector<128xf32> to vector<1x128xf32>
      %25 = tpu.concatenate %20, %22, %24 in 0 : vector<1x128xf32>, vector<1x128xf32>, vector<1x128xf32> -> vector<3x128xf32>
      %c0_11 = arith.constant 0 : index
      %c0_12 = arith.constant 0 : index
      %c0_13 = arith.constant 0 : index
      %26 = vector.load %arg4[%c0_11, %c0_12, %c0_13] : memref<1x3x128xf32, #tpu.memory_space<vmem>>, vector<1x3x128xf32>
      %27 = vector.shape_cast %25 : vector<3x128xf32> to vector<1x3x128xf32>
      %28 = arith.addf %26, %27 : vector<1x3x128xf32>
      %c0_14 = arith.constant 0 : index
      %c0_15 = arith.constant 0 : index
      %c0_16 = arith.constant 0 : index
      %29 = vector.load %arg4[%c0_14, %c0_15, %c0_16] : memref<1x3x128xf32, #tpu.memory_space<vmem>>, vector<1x3x128xf32>
      tpu.vector_store %arg4[%c0_14, %c0_15, %c0_16], %28 {strides = array<i32>} : memref<1x3x128xf32, #tpu.memory_space<vmem>>, vector<1x3x128xf32>,
    } else {
    }
    %c0_i32_6 = arith.constant 0 : i32
    %15 = arith.cmpi sge, %1, %c0_i32_6 : i32
    %16 = arith.extui %15 : i1 to i32
    %c0_i32_7 = arith.constant 0 : i32
    %17 = arith.cmpi ne, %16, %c0_i32_7 : i32
    scf.if %17 {
      %18 = tpu.iota {dimensions = array<i32: 0>} : vector<16x128xi32>
      %c16_i32 = arith.constant 16 : i32
      %19 = arith.muli %1, %c16_i32 : i32
      %20 = vector.broadcast %19 : i32 to vector<16x128xi32>
      %21 = arith.addi %20, %18 : vector<16x128xi32>
      %c16_i32_8 = arith.constant 16 : i32
      %22 = vector.broadcast %c16_i32_8 : i32 to vector<16x128xi32>
      %23 = arith.cmpi slt, %21, %22 : vector<16x128xi32>
      %cst_9 = arith.constant 0.000000e+00 : f32
      %24 = vector.broadcast %cst_9 : f32 to vector<16x128xf32>
      %25 = arith.select %23, %10, %24 : vector<16x128xi1>, vector<16x128xf32>
      %cst_10 = arith.constant 0.000000e+00 : f32
      %26 = vector.broadcast %cst_10 : f32 to vector<16x128xf32>
      %27 = arith.select %23, %11, %26 : vector<16x128xi1>, vector<16x128xf32>
      %28 = arith.mulf %25, %27 : vector<16x128xf32>
      %cst_11 = arith.constant dense<0.000000e+00> : vector<128xf32>
      %29 = vector.multi_reduction <add>, %28, %cst_11 [0] : vector<16x128xf32> to vector<128xf32>
      %30 = vector.shape_cast %29 : vector<128xf32> to vector<1x128xf32>
      %cst_12 = arith.constant dense<0.000000e+00> : vector<128xf32>
      %31 = vector.multi_reduction <add>, %25, %cst_12 [0] : vector<16x128xf32> to vector<128xf32>
      %32 = vector.shape_cast %31 : vector<128xf32> to vector<1x128xf32>
      %cst_13 = arith.constant dense<0.000000e+00> : vector<128xf32>
      %33 = vector.multi_reduction <add>, %27, %cst_13 [0] : vector<16x128xf32> to vector<128xf32>
      %34 = vector.shape_cast %33 : vector<128xf32> to vector<1x128xf32>
      %35 = tpu.concatenate %30, %32, %34 in 0 : vector<1x128xf32>, vector<1x128xf32>, vector<1x128xf32> -> vector<3x128xf32>
      %c0_14 = arith.constant 0 : index
      %c0_15 = arith.constant 0 : index
      %c0_16 = arith.constant 0 : index
      %36 = vector.load %arg4[%c0_14, %c0_15, %c0_16] : memref<1x3x128xf32, #tpu.memory_space<vmem>>, vector<1x3x128xf32>
      %37 = vector.shape_cast %35 : vector<3x128xf32> to vector<1x3x128xf32>
      %38 = arith.addf %36, %37 : vector<1x3x128xf32>
      %c0_17 = arith.constant 0 : index
      %c0_18 = arith.constant 0 : index
      %c0_19 = arith.constant 0 : index
      %39 = vector.load %arg4[%c0_17, %c0_18, %c0_19] : memref<1x3x128xf32, #tpu.memory_space<vmem>>, vector<1x3x128xf32>
      tpu.vector_store %arg4[%c0_17, %c0_18, %c0_19], %38 {strides = array<i32>} : memref<1x3x128xf32, #tpu.memory_space<vmem>>, vector<1x3x128xf32>,
    } else {
    }
    return
  }
  func.func @transform_0(%arg0: i32, %arg1: i32) -> (i32, i32) {
    %c1_i32 = arith.constant 1 : i32
    %0 = arith.muli %arg0, %c1_i32 : i32
    %1 = arith.addi %0, %arg1 : i32
    %c0_i32 = arith.constant 0 : i32
    %2 = arith.minsi %1, %c0_i32 : i32
    %c0_i32_0 = arith.constant 0 : i32
    %c0_i32_1 = arith.constant 0 : i32
    return %2, %c0_i32_0 : i32, i32
  }
  func.func @transform_1(%arg0: i32, %arg1: i32) -> (i32, i32) {
    %c1_i32 = arith.constant 1 : i32
    %0 = arith.muli %arg0, %c1_i32 : i32
    %1 = arith.addi %0, %arg1 : i32
    %c0_i32 = arith.constant 0 : i32
    %2 = arith.minsi %1, %c0_i32 : i32
    %c0_i32_0 = arith.constant 0 : i32
    %c0_i32_1 = arith.constant 0 : i32
    return %2, %c0_i32_0 : i32, i32
  }
  func.func @transform_2(%arg0: i32, %arg1: i32) -> (i32, i32, i32) {
    %c0_i32 = arith.constant 0 : i32
    %c0_i32_0 = arith.constant 0 : i32
    %c0_i32_1 = arith.constant 0 : i32
    return %arg0, %c0_i32, %c0_i32_0 : i32, i32, i32
  }
}

</mosaic_0001>

<llo_original>
// kernel: tpu_custom_call.1
$region0: #{tpu_custom_call.1}
  #allocation0 [shape = 'u32[]', space=smem, size = 0x4, offset = 0x4, fixed_abs, tag = 'smem constant byte address 0x4 - core index']
  #allocation1 [shape = 'u32[144,128]{1,0:T(1,128)}', space=vmem, size = 0x12000, scoped, tag = 'internal scratch']
  %s0 = inlined_call_operand.hbm [shape: f32[16,128], index: 0, kind: input, shape index: {}]
  %s1 = inlined_call_operand.hbm [shape: f32[16,128], index: 1, kind: input, shape index: {}]
  %s2 = inlined_call_operand.vmem [shape: f32[1,3,128], index: 2, kind: output, shape index: {}]
  %s3 = sld [smem:[#allocation0]]
  $region38: #{tpu_custom_call.1} parent=0
    _
  %s5 = ssub.s32 1, %s3
  %s6 = scalar_select 0, %s5, %s3
  $region1: #{tpu_custom_call.1} parent=0
    #allocation2 [shape = 'u8[8192]{0}', space=vmem, size = 0x2000, scoped, tag = 'input window, operand 0, single buffered']
    #allocation3 [shape = 's32[1]{0}', space=sflag, size = 0x4, scoped, tag = 'scoped memory for tpu_custom_call.1']
    #allocation4 [shape = 'u8[8192]{0}', space=vmem, size = 0x2000, scoped, tag = 'input window, operand 1, single buffered']
    #allocation5 [shape = 's32[1]{0}', space=sflag, size = 0x4, scoped, tag = 'scoped memory for tpu_custom_call.1']
    %7 = vsyncpa [#allocation3], 0
    %8 = vsyncpa [#allocation5], 0
    // Predicated region
    $region2: #{tpu_custom_call.1} parent=1 // pred_check
      _
    $region3: #{tpu_custom_call.1} parent=1 // pred_check_branch
      %10 = sbr.rel (0) target = $region5
    $region4: #{tpu_custom_call.1} parent=1 // pred_region
      %s11 = sadd.s32 0, 0
      %p12 = scmp.lt.s32.totalorder %s11, 0
      %s13 = scalar_select %p12, %s11, 0
      %s14 = smul.u32 2, %s13
      %s16 = ssub.s32 256, 256
      %17 = vsyncadd [#allocation3], %s16
      %s18 = smul.addr %s14, 128
      %s19 = scalar_lea.hbm %s0, %s18
      %s20 = sshll.u32 [#allocation2], 4
      %s21 = int_to_ptr.vmem [resolvable:$true] %s20
      %26 = dma.hbm_to_vmem [thread:$0]  %s19, 256, %s21, [#allocation3], 128, 128, 8
    $region5: #{tpu_custom_call.1} parent=1 // pred_fallthru
      _
    // Predicated region
    $region6: #{tpu_custom_call.1} parent=1 // pred_check
      _
    $region7: #{tpu_custom_call.1} parent=1 // pred_check_branch
      %28 = sbr.rel (0) target = $region9
    $region8: #{tpu_custom_call.1} parent=1 // pred_region
      %s29 = sadd.s32 0, 0
      %p30 = scmp.lt.s32.totalorder %s29, 0
      %s31 = scalar_select %p30, %s29, 0
      %s32 = smul.u32 2, %s31
      %s34 = ssub.s32 256, 256
      %35 = vsyncadd [#allocation5], %s34
      %s36 = smul.addr %s32, 128
      %s37 = scalar_lea.hbm %s1, %s36
      %s38 = sshll.u32 [#allocation4], 4
      %s39 = int_to_ptr.vmem [resolvable:$true] %s38
      %44 = dma.hbm_to_vmem [thread:$0]  %s37, 256, %s39, [#allocation5], 128, 128, 8
    $region9: #{tpu_custom_call.1} parent=1 // pred_fallthru
      _
    // Predicated region
    $region10: #{tpu_custom_call.1} parent=1 // pred_check
      _
    $region11: #{tpu_custom_call.1} parent=1 // pred_check_branch
      %46 = sbr.rel (0) target = $region13
    $region12: #{tpu_custom_call.1} parent=1 // pred_region
      %47 = dma.done [#allocation3], 256
    $region13: #{tpu_custom_call.1} parent=1 // pred_fallthru
      _
    // Predicated region
    $region14: #{tpu_custom_call.1} parent=1 // pred_check
      _
    $region15: #{tpu_custom_call.1} parent=1 // pred_check_branch
      %49 = sbr.rel (0) target = $region17
    $region16: #{tpu_custom_call.1} parent=1 // pred_region
      %50 = dma.done [#allocation5], 256
    $region17: #{tpu_custom_call.1} parent=1 // pred_fallthru
      _
    %s51 = sadd.s32 0, 0
    %p52 = scmp.lt.s32.totalorder %s51, 0
    %s53 = scalar_select %p52, %s51, 0
    %s54 = smul.u32 2, %s53
    %s55 = sadd.s32 0, 0
    %p56 = scmp.lt.s32.totalorder %s55, 0
    %s57 = scalar_select %p56, %s55, 0
    %s58 = smul.u32 2, %s57
    %s59 = sadd.s32 0, 0
    %p60 = scmp.eq.s32.totalorder 0, 0
    // Predicated region
    $region18: #{tpu_custom_call.1} parent=1 // pred_check
      %p61 = pneg %p60
    $region19: #{tpu_custom_call.1} parent=1 // pred_check_branch
      %63 = sbr.rel (%p61) target = $region21
    $region20: #{tpu_custom_call.1} parent=1 // pred_region
      %64 = vst [vmem:[%s2] sm:$0x7] 0.0
    $region21: #{tpu_custom_call.1} parent=1 // pred_fallthru
      _
    %v65 = vld [vmem:[#allocation2] sm:$0xff]
    %v66 = vld [vmem:[#allocation2 + $0x8] sm:$0xff]
    %v67 = vxor.u32 %v65, 2147483648
    %v68 = vxor.u32 %v66, 2147483648
    %v69 = vmul.f32 %v67, 1.442695
    %v70 = vpow.pop %v69
    %v71 = vmul.f32 %v68, 1.442695
    %v72 = vpow.pop %v71
    %v73 = vadd.f32 %v70, 1.0
    %v74 = vadd.f32 %v72, 1.0
    %v75 = vrcp.pop %v73
    %v76 = vmul.f32 1.0, %v75
    %v77 = vrcp.pop %v74
    %v78 = vmul.f32 1.0, %v77
    %v79 = vld [vmem:[#allocation4] sm:$0xff]
    %v80 = vld [vmem:[#allocation4 + $0x8] sm:$0xff]
    %p81 = scmp.lt.s32.totalorder %s59, 0
    // Predicated region
    $region22: #{tpu_custom_call.1} parent=1 // pred_check
      %p82 = pneg %p81
    $region23: #{tpu_custom_call.1} parent=1 // pred_check_branch
      %84 = sbr.rel (%p82) target = $region25
    $region24: #{tpu_custom_call.1} parent=1 // pred_region
      %v85 = vmul.f32 %v76, %v79
      %v86 = vmul.f32 %v78, %v80
      %v87 = vadd.f32 %v85, %v86
      %v88 = vrot.slane %v87, 4
      %v89 = vadd.f32 %v87, %v88
      %v90 = vrot.slane %v89, 2
      %v91 = vadd.f32 %v89, %v90
      %v92 = vrot.slane %v91, 1
      %v93 = vadd.f32 %v91, %v92
      %v94 = vadd.f32 %v76, %v78
      %v95 = vrot.slane %v94, 4
      %v96 = vadd.f32 %v94, %v95
      %v97 = vrot.slane %v96, 2
      %v98 = vadd.f32 %v96, %v97
      %v99 = vrot.slane %v98, 1
      %v100 = vadd.f32 %v98, %v99
      %v101 = vadd.f32 %v79, %v80
      %v102 = vrot.slane %v101, 4
      %v103 = vadd.f32 %v101, %v102
      %v104 = vrot.slane %v103, 2
      %v105 = vadd.f32 %v103, %v104
      %v106 = vrot.slane %v105, 1
      %v107 = vadd.f32 %v105, %v106
      %vm108 = vcmask 1040384
      %v109 = vsel %vm108, %v93, %v100
      %vm110 = vcmask 1041408
      %v111 = vsel %vm110, %v109, %v107
      %v112 = vld [vmem:[%s2] sm:$0x7]
      %v113 = vadd.f32 %v112, %v111
      %114 = vst [vmem:[%s2] sm:$0x7] %v113
    $region25: #{tpu_custom_call.1} parent=1 // pred_fallthru
      _
    %p115 = scmp.ge.s32.totalorder %s59, 0
    // Predicated region
    $region26: #{tpu_custom_call.1} parent=1 // pred_check
      %p116 = pneg %p115
    $region27: #{tpu_custom_call.1} parent=1 // pred_check_branch
      %118 = sbr.rel (%p116) target = $region29
    $region28: #{tpu_custom_call.1} parent=1 // pred_region
      %v119 = vlaneseq
      %v120 = vshrl.u32 %v119, 7
      %v121 = vadd.s32 %v120, 8
      %s122 = smul.u32 %s59, 16
      %v123 = vstv %s122
      %v124 = vadd.s32 %v123, %v120
      %v125 = vadd.s32 %v123, %v121
      %vm126 = vcmp.lt.s32.totalorder %v124, 16
      %vm127 = vcmp.lt.s32.totalorder %v125, 16
      %v128 = vsel %vm126, %v76, 0.0
      %v129 = vsel %vm127, %v78, 0.0
      %v130 = vsel %vm126, %v79, 0.0
      %v131 = vsel %vm127, %v80, 0.0
      %v132 = vmul.f32 %v128, %v130
      %v133 = vmul.f32 %v129, %v131
      %v134 = vadd.f32 %v132, %v133
      %v135 = vrot.slane %v134, 4
      %v136 = vadd.f32 %v134, %v135
      %v137 = vrot.slane %v136, 2
      %v138 = vadd.f32 %v136, %v137
      %v139 = vrot.slane %v138, 1
      %v140 = vadd.f32 %v138, %v139
      %v141 = vadd.f32 %v128, %v129
      %v142 = vrot.slane %v141, 4
      %v143 = vadd.f32 %v141, %v142
      %v144 = vrot.slane %v143, 2
      %v145 = vadd.f32 %v143, %v144
      %v146 = vrot.slane %v145, 1
      %v147 = vadd.f32 %v145, %v146
      %v148 = vadd.f32 %v130, %v131
      %v149 = vrot.slane %v148, 4
      %v150 = vadd.f32 %v148, %v149
      %v151 = vrot.slane %v150, 2
      %v152 = vadd.f32 %v150, %v151
      %v153 = vrot.slane %v152, 1
      %v154 = vadd.f32 %v152, %v153
      %vm155 = vcmask 1040384
      %v156 = vsel %vm155, %v140, %v147
      %vm157 = vcmask 1041408
      %v158 = vsel %vm157, %v156, %v154
      %v159 = vld [vmem:[%s2] sm:$0x7]
      %v160 = vadd.f32 %v159, %v158
      %161 = vst [vmem:[%s2] sm:$0x7] %v160
    $region29: #{tpu_custom_call.1} parent=1 // pred_fallthru
      _
    // Predicated region
    $region30: #{tpu_custom_call.1} parent=1 // pred_check
      _
    $region31: #{tpu_custom_call.1} parent=1 // pred_check_branch
      %163 = sbr.rel (0) target = $region33
    $region32: #{tpu_custom_call.1} parent=1 // pred_region
      _
    $region33: #{tpu_custom_call.1} parent=1 // pred_fallthru
      _
    // Predicated region
    $region34: #{tpu_custom_call.1} parent=1 // pred_check
      _
    $region35: #{tpu_custom_call.1} parent=1 // pred_check_branch
      %165 = sbr.rel (0) target = $region37
    $region36: #{tpu_custom_call.1} parent=1 // pred_region
      _
    $region37: #{tpu_custom_call.1} parent=1 // pred_fallthru
      _
    %166 = vsyncpa [#allocation3], 1
    %167 = vsyncpa [#allocation5], 1

</llo_original>
